<compile_context>
chip_gen: v5e
topology: v5e:2x2
jax: 0.10.0
libtpu: 0.0.40
codegen_flags: <defaults>
</compile_context>

<pallas_src>
import functools

import jax
import jax.numpy as jnp
from jax.experimental import pallas as pl
from jax.experimental.pallas import tpu as pltpu


_NEG = -1e30  # finite "-inf": padded vocab lanes never create NaN/Inf arithmetic


def _round_up(x, m):
    return (x + m - 1) // m * m


def _vmem_bytes_est(tb, tv, dp, nv):
    """Rough VMEM footprint of one grid step (scratch + double-buffered blocks)."""
    stage = nv * tb * tv * 4        # staged f32 logits scratch (single copy)
    norm = tb * 128 * 4             # (TB, 1) normalizer scratch (lane padded)
    w = 2 * tv * dp * 2             # bf16 W tile, double buffered
    outb = 2 * tb * tv * 4          # f32 output tile, double buffered
    hid = 2 * tb * dp * 2           # bf16 hidden tile, double buffered
    bias = 2 * 8 * tv * 4           # bias tile, double buffered (sublane padded)
    return stage + norm + w + outb + hid + bias


def _cbow_kernel(hid_ref, w_ref, b_ref, out_ref, stage_ref, norm_ref, *, nv):
    """Grid = (batch tile, pass, vocab tile).

    pass 0: logits for vocab tile kv -> stage scratch (W streamed once).
    pass 1: (kv==0) compute normalizer once; every kv: out = stage[kv] - norm.
    """
    j = pl.program_id(1)    # 0: compute & stage logits, 1: normalize & write
    kv = pl.program_id(2)   # vocab tile index

    @pl.when(j == 0)
    def _():
        # MXU matmul, contract on D against the (TV, Dp) weight tile (no transpose
        # materialized).  bf16 inputs, f32 accumulation.  Padded vocab lanes get
        # -1e30 from the bias (their W rows are zero), so no per-step masking.
        logits = jax.lax.dot_general(
            hid_ref[...], w_ref[...],
            dimension_numbers=(((1,), (1,)), ((), ())),
            preferred_element_type=jnp.float32) + b_ref[...]
        stage_ref[kv] = logits

    @pl.when((j == 1) & (kv == 0))
    def _():
        # Normalizer for the whole batch tile, computed once from the staged
        # logits (everything already lives in VMEM).  nv is static -> unrolled.
        m = jnp.full(norm_ref.shape, _NEG, jnp.float32)
        for t in range(nv):
            m = jnp.maximum(m, jnp.max(stage_ref[t], axis=-1, keepdims=True))
        l = jnp.zeros(norm_ref.shape, jnp.float32)
        for t in range(nv):
            l += jnp.sum(jnp.exp(stage_ref[t] - m), axis=-1, keepdims=True)
        norm_ref[...] = m + jnp.log(l)

    @pl.when(j == 1)
    def _():
        # Full-width, lane-dense store of the log-softmax tile.
        out_ref[...] = (stage_ref[kv] - norm_ref[...]).astype(out_ref.dtype)


def cbow_forward(inputs, embedding, linear_w, linear_b, *,
                 param_dtype=jnp.bfloat16, block_b=128, block_v=1024,
                 vmem_budget_bytes=48 * 2**20):
    """CBOW forward: log_softmax(sum_c Emb[ctx[:, c]] @ W.T + b).

    inputs:    (B, C) int   context word ids
    embedding: (V, D) float nn.Embedding weight
    linear_w:  (V, D) float nn.Linear(D, V) weight (NOT transposed here)
    linear_b:  (V,)   float
    returns:   (B, V) float32 log-probabilities
    """
    B, C = inputs.shape
    V, D = embedding.shape

    Dp = _round_up(D, 128)                                  # lane-dense hidden dim
    TV = min(_round_up(block_v, 128), _round_up(V, 128))    # vocab tile (multiple of 128)
    Vp = _round_up(V, TV)                                   # padded vocab, divisible by TV
    nv = Vp // TV                                           # invariant: Vp - V < TV

    # Batch tile: large (MXU M-dim), multiple of 8, never larger than needed, and
    # auto-halved so staged logits + double-buffered tiles fit the VMEM budget
    # (48 MiB default keeps the same config legal on v7x's 64 MiB VMEM).
    TB = max(8, min(_round_up(block_b, 8), _round_up(B, 8)))
    while TB > 8 and _vmem_bytes_est(TB, TV, Dp, nv) > vmem_budget_bytes:
        TB = max(8, TB // 2)
    Bp = _round_up(B, TB)
    nb = Bp // TB

    # --- CBOW hidden = sum_c Emb[ctx[:, c]] ---------------------------------
    # Plain XLA gather+sum in the wrapper (per perf review): the kernel receives a
    # lane/sublane-dense (Bp, Dp) bf16 hidden instead of a resident (Vp, Dp) table.
    emb_q = embedding.astype(param_dtype)
    hidden = jnp.sum(emb_q[inputs.astype(jnp.int32)].astype(jnp.float32), axis=1)
    hid = jnp.zeros((Bp, Dp), param_dtype).at[:B, :D].set(hidden.astype(param_dtype))

    # Lane-dense, zero-padded linear weight; vocab-pad mask baked into the bias.
    w = jnp.zeros((Vp, Dp), param_dtype).at[:V, :D].set(linear_w.astype(param_dtype))
    bias = jnp.full((1, Vp), _NEG, jnp.float32).at[0, :V].set(linear_b.astype(jnp.float32))

    vmem_limit = int(min(64 * 2**20,
                         max(32 * 2**20, int(1.25 * _vmem_bytes_est(TB, TV, Dp, nv)))))

    kernel = functools.partial(_cbow_kernel, nv=nv)

    # Index-map pinning:
    #   * W / bias follow kv during pass 0 and stay on their last block during
    #     pass 1 (no re-stream, no extra fetch).
    #   * The output block index is constant (b, 0) during pass 0, so Pallas never
    #     flushes a stale output buffer to HBM (the phantom writeback is gone).
    w_map = lambda b, j, kv: (kv * (1 - j) + (nv - 1) * j, 0)
    bias_map = lambda b, j, kv: (0, kv * (1 - j) + (nv - 1) * j)
    out_map = lambda b, j, kv: (b, kv * j)

    out = pl.pallas_call(
        kernel,
        out_shape=jax.ShapeDtypeStruct((Bp, Vp), jnp.float32),
        grid_spec=pltpu.PrefetchScalarGridSpec(
            num_scalar_prefetch=0,
            grid=(nb, 2, nv),                                      # (batch tiles, pass, vocab tiles)
            in_specs=[
                pl.BlockSpec((TB, Dp), lambda b, j, kv: (b, 0)),   # hidden (bf16, per batch tile)
                pl.BlockSpec((TV, Dp), w_map),                     # linear W, vocab-tiled, pinned in pass 1
                pl.BlockSpec((1, TV), bias_map),                   # bias (+ -1e30 pad mask), pinned in pass 1
            ],
            out_specs=pl.BlockSpec((TB, TV), out_map),
            scratch_shapes=[
                pltpu.VMEM((nv, TB, TV), jnp.float32),             # staged f32 logits for this batch tile
                pltpu.VMEM((TB, 1), jnp.float32),                  # normalizer m + log(sum exp)
            ],
        ),
        compiler_params=pltpu.CompilerParams(
            # batch tiles shard across TensorCores; pass/vocab carry scratch state.
            dimension_semantics=("parallel", "arbitrary", "arbitrary"),
            vmem_limit_bytes=vmem_limit,
        ),
    )(hid, w, bias)

    return out[:B, :V]


if __name__ == "__main__":
    # Small, tutorial-consistent sizes: CONTEXT_SIZE=2 on each side -> C=4.
    B, C, V, D = 2, 4, 64, 32

    key = jax.random.PRNGKey(0)
    k_emb, k_w, k_b, k_idx = jax.random.split(key, 4)

    embedding = jax.random.normal(k_emb, (V, D), dtype=jnp.float32)
    linear_w = jax.random.normal(k_w, (V, D), dtype=jnp.float32) * 0.1
    linear_b = jax.random.normal(k_b, (V,), dtype=jnp.float32) * 0.1
    inputs = jax.random.randint(k_idx, (B, C), 0, V, dtype=jnp.int32)

    out = cbow_forward(inputs, embedding, linear_w, linear_b)
    out = jax.block_until_ready(out)

    # Reference uses the same bf16-quantized hidden/weights the kernel consumes;
    # the kernel's parameters are bf16 (not exact f32 parity with PyTorch f32).
    emb_q = embedding.astype(jnp.bfloat16)
    hidden_q = (jnp.sum(emb_q[inputs].astype(jnp.float32), axis=1)
                .astype(jnp.bfloat16).astype(jnp.float32))
    w_q = linear_w.astype(jnp.bfloat16).astype(jnp.float32)
    logits_ref = hidden_q @ w_q.T + linear_b
    ref = jax.nn.log_softmax(logits_ref, axis=-1)

    assert out.shape == (B, V)
    assert bool(jnp.allclose(out, ref, atol=5e-2)), "mismatch vs reference"

    print("KERNEL_OK")
</pallas_src>

<mosaic_0001>
module attributes {stable_mosaic.version = 11 : i64} {
  func.func @_cbow_kernel(%arg0: i32, %arg1: i32, %arg2: i32, %arg3: memref<8x128xbf16, #tpu.memory_space<vmem>>, %arg4: memref<128x128xbf16, #tpu.memory_space<vmem>>, %arg5: memref<1x128xf32, #tpu.memory_space<vmem>>, %arg6: memref<8x128xf32, #tpu.memory_space<vmem>>, %arg7: memref<1x8x128xf32, #tpu.memory_space<vmem>>, %arg8: memref<8x1xf32, #tpu.memory_space<vmem>>) attributes {dimension_semantics = [#tpu.dimension_semantics<parallel>, #tpu.dimension_semantics<arbitrary>, #tpu.dimension_semantics<arbitrary>], iteration_bounds = array<i64: 1, 2, 1>, scalar_prefetch = 0 : i64, scratch_operands = 2 : i64, tpu.core_type = #tpu.core_type<tc>, window_params = [{transform_indices = @transform_0, window_bounds = array<i64: 8, 128>}, {transform_indices = @transform_1, window_bounds = array<i64: 128, 128>}, {transform_indices = @transform_2, window_bounds = array<i64: 1, 128>}, {transform_indices = @transform_3, window_bounds = array<i64: 8, 128>}]} {
    %c0_i32 = arith.constant 0 : i32
    %0 = arith.cmpi eq, %arg1, %c0_i32 : i32
    %1 = arith.extui %0 : i1 to i32
    %c0_i32_0 = arith.constant 0 : i32
    %2 = arith.cmpi ne, %1, %c0_i32_0 : i32
    scf.if %2 {
      %c0 = arith.constant 0 : index
      %c0_5 = arith.constant 0 : index
      %11 = vector.load %arg3[%c0, %c0_5] : memref<8x128xbf16, #tpu.memory_space<vmem>>, vector<8x128xbf16>
      %c0_6 = arith.constant 0 : index
      %c0_7 = arith.constant 0 : index
      %12 = vector.load %arg4[%c0_6, %c0_7] : memref<128x128xbf16, #tpu.memory_space<vmem>>, vector<128x128xbf16>
      %cst = arith.constant dense<0.000000e+00> : vector<8x128xf32>
      %13 = tpu.matmul %11, %12, %cst {dimension_numbers = #tpu.dot_dimension_numbers<[1], [1], [0], [0], [0, 0, 1, 0], [], []>} : vector<8x128xbf16>, vector<128x128xbf16>, vector<8x128xf32> -> vector<8x128xf32>
      %c0_8 = arith.constant 0 : index
      %c0_9 = arith.constant 0 : index
      %14 = vector.load %arg5[%c0_8, %c0_9] : memref<1x128xf32, #tpu.memory_space<vmem>>, vector<1x128xf32>
      %15 = vector.broadcast %14 : vector<1x128xf32> to vector<8x128xf32>
      %16 = arith.addf %13, %15 : vector<8x128xf32>
      %17 = arith.index_cast %arg2 : i32 to index
      %c0_10 = arith.constant 0 : index
      %c0_11 = arith.constant 0 : index
      %18 = vector.load %arg7[%17, %c0_10, %c0_11] : memref<1x8x128xf32, #tpu.memory_space<vmem>>, vector<1x8x128xf32>
      %19 = vector.shape_cast %18 : vector<1x8x128xf32> to vector<8x128xf32>
      %20 = vector.shape_cast %16 : vector<8x128xf32> to vector<1x8x128xf32>
      tpu.vector_store %arg7[%17, %c0_10, %c0_11], %20 {strides = array<i32>} : memref<1x8x128xf32, #tpu.memory_space<vmem>>, vector<1x8x128xf32>,
    } else {
    }
    %c1_i32 = arith.constant 1 : i32
    %3 = arith.cmpi eq, %arg1, %c1_i32 : i32
    %c0_i32_1 = arith.constant 0 : i32
    %4 = arith.cmpi eq, %arg2, %c0_i32_1 : i32
    %5 = arith.andi %3, %4 : i1
    %6 = arith.extui %5 : i1 to i32
    %c0_i32_2 = arith.constant 0 : i32
    %7 = arith.cmpi ne, %6, %c0_i32_2 : i32
    scf.if %7 {
      %cst = arith.constant -1.000000e+30 : f32
      %11 = vector.broadcast %cst : f32 to vector<8x1xf32>
      %c0 = arith.constant 0 : index
      %c0_5 = arith.constant 0 : index
      %c0_6 = arith.constant 0 : index
      %12 = vector.load %arg7[%c0, %c0_5, %c0_6] : memref<1x8x128xf32, #tpu.memory_space<vmem>>, vector<1x8x128xf32>
      %13 = vector.shape_cast %12 : vector<1x8x128xf32> to vector<8x128xf32>
      %cst_7 = arith.constant dense<0xFF800000> : vector<8xf32>
      %14 = vector.multi_reduction <maximumf>, %13, %cst_7 [1] : vector<8x128xf32> to vector<8xf32>
      %15 = vector.shape_cast %14 : vector<8xf32> to vector<8x1xf32>
      %16 = arith.maximumf %11, %15 : vector<8x1xf32>
      %cst_8 = arith.constant 0.000000e+00 : f32
      %17 = vector.broadcast %cst_8 : f32 to vector<8x1xf32>
      %c0_9 = arith.constant 0 : index
      %c0_10 = arith.constant 0 : index
      %c0_11 = arith.constant 0 : index
      %18 = vector.load %arg7[%c0_9, %c0_10, %c0_11] : memref<1x8x128xf32, #tpu.memory_space<vmem>>, vector<1x8x128xf32>
      %19 = vector.shape_cast %18 : vector<1x8x128xf32> to vector<8x128xf32>
      %20 = vector.broadcast %16 : vector<8x1xf32> to vector<8x128xf32>
      %21 = arith.subf %19, %20 : vector<8x128xf32>
      %22 = math.exp %21 : vector<8x128xf32>
      %cst_12 = arith.constant dense<0.000000e+00> : vector<8xf32>
      %23 = vector.multi_reduction <add>, %22, %cst_12 [1] : vector<8x128xf32> to vector<8xf32>
      %24 = vector.shape_cast %23 : vector<8xf32> to vector<8x1xf32>
      %25 = arith.addf %17, %24 : vector<8x1xf32>
      %26 = math.log %25 : vector<8x1xf32>
      %27 = arith.addf %16, %26 : vector<8x1xf32>
      %c0_13 = arith.constant 0 : index
      %c0_14 = arith.constant 0 : index
      %28 = vector.load %arg8[%c0_13, %c0_14] : memref<8x1xf32, #tpu.memory_space<vmem>>, vector<8x1xf32>
      tpu.vector_store %arg8[%c0_13, %c0_14], %27 {strides = array<i32>} : memref<8x1xf32, #tpu.memory_space<vmem>>, vector<8x1xf32>,
    } else {
    }
    %c1_i32_3 = arith.constant 1 : i32
    %8 = arith.cmpi eq, %arg1, %c1_i32_3 : i32
    %9 = arith.extui %8 : i1 to i32
    %c0_i32_4 = arith.constant 0 : i32
    %10 = arith.cmpi ne, %9, %c0_i32_4 : i32
    scf.if %10 {
      %11 = arith.index_cast %arg2 : i32 to index
      %c0 = arith.constant 0 : index
      %c0_5 = arith.constant 0 : index
      %12 = vector.load %arg7[%11, %c0, %c0_5] : memref<1x8x128xf32, #tpu.memory_space<vmem>>, vector<1x8x128xf32>
      %13 = vector.shape_cast %12 : vector<1x8x128xf32> to vector<8x128xf32>
      %c0_6 = arith.constant 0 : index
      %c0_7 = arith.constant 0 : index
      %14 = vector.load %arg8[%c0_6, %c0_7] : memref<8x1xf32, #tpu.memory_space<vmem>>, vector<8x1xf32>
      %15 = vector.broadcast %14 : vector<8x1xf32> to vector<8x128xf32>
      %16 = arith.subf %13, %15 : vector<8x128xf32>
      %c0_8 = arith.constant 0 : index
      %c0_9 = arith.constant 0 : index
      %17 = vector.load %arg6[%c0_8, %c0_9] : memref<8x128xf32, #tpu.memory_space<vmem>>, vector<8x128xf32>
      tpu.vector_store %arg6[%c0_8, %c0_9], %16 {strides = array<i32>} : memref<8x128xf32, #tpu.memory_space<vmem>>, vector<8x128xf32>,
    } else {
    }
    return
  }
  func.func @transform_0(%arg0: i32, %arg1: i32, %arg2: i32) -> (i32, i32) {
    %c0_i32 = arith.constant 0 : i32
    %c0_i32_0 = arith.constant 0 : i32
    return %arg0, %c0_i32 : i32, i32
  }
  func.func @transform_1(%arg0: i32, %arg1: i32, %arg2: i32) -> (i32, i32) {
    %c1_i32 = arith.constant 1 : i32
    %0 = arith.subi %c1_i32, %arg1 : i32
    %1 = arith.muli %arg2, %0 : i32
    %c0_i32 = arith.constant 0 : i32
    %2 = arith.muli %c0_i32, %arg1 : i32
    %3 = arith.addi %1, %2 : i32
    %c0_i32_0 = arith.constant 0 : i32
    %c0_i32_1 = arith.constant 0 : i32
    return %3, %c0_i32_0 : i32, i32
  }
  func.func @transform_2(%arg0: i32, %arg1: i32, %arg2: i32) -> (i32, i32) {
    %c1_i32 = arith.constant 1 : i32
    %0 = arith.subi %c1_i32, %arg1 : i32
    %1 = arith.muli %arg2, %0 : i32
    %c0_i32 = arith.constant 0 : i32
    %2 = arith.muli %c0_i32, %arg1 : i32
    %3 = arith.addi %1, %2 : i32
    %c0_i32_0 = arith.constant 0 : i32
    %c0_i32_1 = arith.constant 0 : i32
    return %c0_i32_0, %3 : i32, i32
  }
  func.func @transform_3(%arg0: i32, %arg1: i32, %arg2: i32) -> (i32, i32) {
    %0 = arith.muli %arg2, %arg1 : i32
    %c0_i32 = arith.constant 0 : i32
    return %arg0, %0 : i32, i32
  }
}

</mosaic_0001>

<llo_original>
// kernel: tpu_custom_call.1
$region0: #{tpu_custom_call.1}
  #allocation0 [shape = 'u32[]', space=smem, size = 0x4, offset = 0x4, fixed_abs, tag = 'smem constant byte address 0x4 - core index']
  #allocation1 [shape = 'u32[72,128]{1,0:T(1,128)}', space=vmem, size = 0x9000, scoped, tag = 'internal scratch']
  #allocation2 [shape = 'f32[1,8,128]{2,1,0:T(8,128)}', space=vmem, size = 0x1000, scoped, tag = 'scratch operand']
  #allocation3 [shape = 'f32[8,1]{1,0:T(8,128)}', space=vmem, size = 0x1000, scoped, tag = 'scratch operand']
  %s0 = inlined_call_operand.hbm [shape: bf16[8,128], index: 0, kind: input, shape index: {}]
  %s1 = inlined_call_operand.hbm [shape: bf16[128,128], index: 1, kind: input, shape index: {}]
  %s2 = inlined_call_operand.vmem [shape: f32[1,128], index: 2, kind: input, shape index: {}]
  %s3 = inlined_call_operand.hbm [shape: f32[8,128], index: 3, kind: output, shape index: {}]
  %s4 = sld [smem:[#allocation0]]
  $region65: #{tpu_custom_call.1} parent=0
    _
  %s6 = ssub.s32 1, %s4
  %s7 = scalar_select 0, %s6, %s4
  $region1: #{tpu_custom_call.1} parent=0
    #allocation4 [shape = 'u8[2048]{0}', space=vmem, size = 0x800, scoped, tag = 'input window, operand 0, single buffered']
    #allocation5 [shape = 's32[2]{0}', space=sflag, size = 0x8, scoped, tag = 'scoped memory for tpu_custom_call.1']
    #allocation6 [shape = 's32[2]{0}', space=sflag, size = 0x8, scoped, tag = 'scoped memory for tpu_custom_call.1']
    #allocation7 [shape = 'u8[65536]{0}', space=vmem, size = 0x10000, scoped, tag = 'input window, operand 1']
    #allocation8 [shape = 's32[2]{0}', space=sflag, size = 0x8, scoped, tag = 'scoped memory for tpu_custom_call.1']
    #allocation9 [shape = 'u8[8192]{0}', space=vmem, size = 0x2000, scoped, tag = 'output window, operand 0']
    %8 = vsyncpa [#allocation5], 0
    %9 = vsyncpa [#allocation8], 0
    %s10 = scalar_lea.sflag [#allocation8], 1
    %11 = vsyncpa %s10, 0
    %12 = vsyncpa [#allocation6], 0
    %s13 = scalar_lea.sflag [#allocation6], 1
    %14 = vsyncpa %s13, 0
    loop: start=0, step=1, limit=4
    $region2: #{tpu_custom_call.1} parent=1 // loop_pre_header
      _
    $region3: #{tpu_custom_call.1} parent=1 // loop_header
      %s16 = sphi 0, %s20
      %p17 = scmp.ge.s32.totalorder %s16, 4
      %s23 = sphi 0, %s42
      %s24 = sphi 0, %s38
      %s25 = sphi 0, %s34
      %s26 = sphi 0, %s23
      %s27 = sphi 0, %s24
      %s28 = sphi 0, %s25
      %s29 = sphi 0, %s26
      %s30 = sphi 0, %s27
      %s31 = sphi 0, %s28
      %s45 = sphi 0, %s47
      %s48 = sphi 0, %s45
      %s49 = sphi 0, %s48
      %s65 = sphi 0, %s49
      %s75 = sphi 0, %s77
      %s78 = sphi 0, %s75
      %s79 = sphi 0, %s78
      %s95 = sphi 0, %s79
      %s105 = sphi 0, %s107
      %s108 = sphi 0, %s105
      %s109 = sphi 0, %s108
      %s125 = sphi 0, %s109
      %s135 = sphi 0, %s137
      %s138 = sphi 0, %s135
      %s139 = sphi 0, %s138
      %s155 = sphi 0, %s139
    $region4: #{tpu_custom_call.1} parent=1 // loop_header_branch
      %19 = sbr.rel (%p17) target = $region8
    $region5: #{tpu_custom_call.1} parent=1 // loop_body
      %s21 = ssub.s32 %s16, 1
      %s22 = ssub.s32 %s16, 2
      %s32 = sadd.s32 1, %s25
      %p33 = scmp.ge.s32.totalorder %s32, 1
      %s34 = scalar_select %p33, 0, %s32
      %s35 = sadd.s32 1, %s24
      %s36 = scalar_select %p33, %s35, %s24
      %p37 = scmp.ge.s32.totalorder %s36, 2
      %s38 = scalar_select %p37, 0, %s36
      %s39 = sadd.s32 1, %s23
      %s40 = scalar_select %p37, %s39, %s23
      %p41 = scmp.ge.s32.totalorder %s40, 1
      %s42 = scalar_select %p41, 0, %s40
      %s43 = ssub.s32 %s23, %s42
      %p44 = scmp.eq.s32.totalorder %s43, 0
      %s46 = sadd.s32 %s45, 1
      %s47 = scalar_select %p44, %s45, %s46
      %p50 = pneg %p44
      %p51 = scmp.eq.s32.totalorder %s16, 1
      %p52 = por %p50, %p51
      %p53 = scmp.ne.s32.totalorder %s45, %s48
      %p54 = scmp.eq.s32.totalorder %s16, 0
      %p55 = por %p53, %p54
      %p56 = scmp.ne.s32.totalorder %s45, %s48
      %p57 = scmp.eq.s32.totalorder %s21, 1
      %p58 = por %p56, %p57
      %p59 = scmp.ne.s32.totalorder %s48, %s49
      %p60 = scmp.eq.s32.totalorder %s21, 0
      %p61 = por %p59, %p60
      %p62 = scmp.ne.s32.totalorder %s48, %s49
      %p63 = scmp.eq.s32.totalorder %s22, 1
      %p64 = por %p62, %p63
      %p66 = scmp.ne.s32.totalorder %s49, %s65
      %p67 = scmp.eq.s32.totalorder %s22, 0
      %p68 = por %p66, %p67
      %s69 = ssub.s32 1, %s24
      %s70 = smul.u32 %s25, %s69
      %s71 = ssub.s32 1, %s38
      %s72 = smul.u32 %s34, %s71
      %s73 = ssub.s32 %s70, %s72
      %p74 = scmp.eq.s32.totalorder %s73, 0
      %s76 = sadd.s32 %s75, 1
      %s77 = scalar_select %p74, %s75, %s76
      %p80 = pneg %p74
      %p81 = scmp.eq.s32.totalorder %s16, 1
      %p82 = por %p80, %p81
      %p83 = scmp.ne.s32.totalorder %s75, %s78
      %p84 = scmp.eq.s32.totalorder %s16, 0
      %p85 = por %p83, %p84
      %p86 = scmp.ne.s32.totalorder %s75, %s78
      %p87 = scmp.eq.s32.totalorder %s21, 1
      %p88 = por %p86, %p87
      %p89 = scmp.ne.s32.totalorder %s78, %s79
      %p90 = scmp.eq.s32.totalorder %s21, 0
      %p91 = por %p89, %p90
      %p92 = scmp.ne.s32.totalorder %s78, %s79
      %p93 = scmp.eq.s32.totalorder %s22, 1
      %p94 = por %p92, %p93
      %p96 = scmp.ne.s32.totalorder %s79, %s95
      %p97 = scmp.eq.s32.totalorder %s22, 0
      %p98 = por %p96, %p97
      %s99 = ssub.s32 1, %s24
      %s100 = smul.u32 %s25, %s99
      %s101 = ssub.s32 1, %s38
      %s102 = smul.u32 %s34, %s101
      %s103 = ssub.s32 %s100, %s102
      %p104 = scmp.eq.s32.totalorder %s103, 0
      %s106 = sadd.s32 %s105, 1
      %s107 = scalar_select %p104, %s105, %s106
      %p110 = pneg %p104
      %p111 = scmp.eq.s32.totalorder %s16, 1
      %p112 = por %p110, %p111
      %p113 = scmp.ne.s32.totalorder %s105, %s108
      %p114 = scmp.eq.s32.totalorder %s16, 0
      %p115 = por %p113, %p114
      %p116 = scmp.ne.s32.totalorder %s105, %s108
      %p117 = scmp.eq.s32.totalorder %s21, 1
      %p118 = por %p116, %p117
      %p119 = scmp.ne.s32.totalorder %s108, %s109
      %p120 = scmp.eq.s32.totalorder %s21, 0
      %p121 = por %p119, %p120
      %p122 = scmp.ne.s32.totalorder %s108, %s109
      %p123 = scmp.eq.s32.totalorder %s22, 1
      %p124 = por %p122, %p123
      %p126 = scmp.ne.s32.totalorder %s109, %s125
      %p127 = scmp.eq.s32.totalorder %s22, 0
      %p128 = por %p126, %p127
      %s129 = smul.u32 %s25, %s24
      %s130 = smul.u32 %s34, %s38
      %s131 = ssub.s32 %s23, %s42
      %s132 = ssub.s32 %s129, %s130
      %s133 = sor.u32 %s131, %s132
      %p134 = scmp.eq.s32.totalorder %s133, 0
      %s136 = sadd.s32 %s135, 1
      %s137 = scalar_select %p134, %s135, %s136
      %p140 = pneg %p134
      %p141 = scmp.eq.s32.totalorder %s16, 1
      %p142 = por %p140, %p141
      %p143 = scmp.ne.s32.totalorder %s135, %s138
      %p144 = scmp.eq.s32.totalorder %s16, 0
      %p145 = por %p143, %p144
      %p146 = scmp.ne.s32.totalorder %s135, %s138
      %p147 = scmp.eq.s32.totalorder %s21, 1
      %p148 = por %p146, %p147
      %p149 = scmp.ne.s32.totalorder %s138, %s139
      %p150 = scmp.eq.s32.totalorder %s21, 0
      %p151 = por %p149, %p150
      %p152 = scmp.ne.s32.totalorder %s138, %s139
      %p153 = scmp.eq.s32.totalorder %s22, 1
      %p154 = por %p152, %p153
      %p156 = scmp.ne.s32.totalorder %s139, %s155
      %p157 = scmp.eq.s32.totalorder %s22, 0
      %p158 = por %p156, %p157
      %p159 = scmp.le.s32.totalorder 1, %s16
      %p160 = scmp.lt.s32.totalorder %s16, 3
      %p161 = pnand %p159, %p160
      %p162 = pneg %p161
      // Predicated region
      $region9: #{tpu_custom_call.1} parent=5 // pred_check
        _
      $region10: #{tpu_custom_call.1} parent=5 // pred_check_branch
        %164 = sbr.rel (%p161) target = $region12
      $region11: #{tpu_custom_call.1} parent=5 // pred_region
        %s165 = ssub.s32 %s16, 1
        // Predicated region
        $region13: #{tpu_custom_call.1} parent=11 // pred_check
          %p166 = pneg %p61
        $region14: #{tpu_custom_call.1} parent=11 // pred_check_branch
          %168 = sbr.rel (%p166) target = $region16
        $region15: #{tpu_custom_call.1} parent=11 // pred_region
          %170 = vsyncadd [#allocation5], 0
          %s171 = smul.addr %s26, 4
          %s172 = scalar_lea.hbm %s0, %s171
          %s174 = sshll.u32 %s172, 4
          %s175 = int_to_ptr.hbm [resolvable:$true] %s174
          %s176 = sshll.u32 [#allocation4], 4
          %s177 = int_to_ptr.vmem [resolvable:$true] %s176
          %179 = dma.hbm_to_vmem [thread:$0]  %s175, 64, %s177, [#allocation5]
        $region16: #{tpu_custom_call.1} parent=11 // pred_fallthru
          _
      $region12: #{tpu_custom_call.1} parent=5 // pred_fallthru
        _
      %p180 = scmp.lt.s32.totalorder %s16, 2
      // Predicated region
      $region17: #{tpu_custom_call.1} parent=5 // pred_check
        %p181 = pneg %p180
      $region18: #{tpu_custom_call.1} parent=5 // pred_check_branch
        %183 = sbr.rel (%p181) target = $region20
      $region19: #{tpu_custom_call.1} parent=5 // pred_region
        // Predicated region
        $region21: #{tpu_custom_call.1} parent=19 // pred_check
          %p184 = pneg %p85
        $region22: #{tpu_custom_call.1} parent=19 // pred_check_branch
          %186 = sbr.rel (%p184) target = $region24
        $region23: #{tpu_custom_call.1} parent=19 // pred_region
          %s187 = sand.u32 %s75, 1
          %s188 = scalar_lea.sflag [#allocation8], %s187
          %s189 = sand.u32 %s75, 1
          %s190 = smul.addr %s189, 64
          %s191 = scalar_lea.vmem [#allocation7], %s190
          %s192 = ssub.s32 1, %s24
          %s193 = smul.u32 %s25, %s192
          %s194 = smul.u32 16, %s193
          %196 = vsyncadd %s188, 0
          %s197 = smul.addr %s194, 4
          %s198 = scalar_lea.hbm %s1, %s197
          %s199 = sshll.u32 %s198, 4
          %s200 = int_to_ptr.hbm [resolvable:$true] %s199
          %s201 = sshll.u32 %s191, 4
          %s202 = int_to_ptr.vmem [resolvable:$true] %s201
          %207 = dma.hbm_to_vmem [thread:$0]  %s200, 1024, %s202, %s188, 64, 64, 4
        $region24: #{tpu_custom_call.1} parent=19 // pred_fallthru
          _
        // Predicated region
        $region25: #{tpu_custom_call.1} parent=19 // pred_check
          %p208 = pneg %p115
        $region26: #{tpu_custom_call.1} parent=19 // pred_check_branch
          %210 = sbr.rel (%p208) target = $region28
        $region27: #{tpu_custom_call.1} parent=19 // pred_region
          %s211 = ssub.s32 1, %s24
          %s212 = smul.u32 %s25, %s211
          %p213 = scmp.lt.s32.totalorder %s212, 0
          %s214 = scalar_select %p213, %s212, 0
          %s215 = scalar_lea.vmem %s2, %s214
          %s216 = ssub.s32 1, %s24
          %s217 = smul.u32 %s25, %s216
        $region28: #{tpu_custom_call.1} parent=19 // pred_fallthru
          _
      $region20: #{tpu_custom_call.1} parent=5 // pred_fallthru
        _
      %p218 = scmp.le.s32.totalorder 1, %s16
      %p219 = scmp.lt.s32.totalorder %s16, 3
      %p220 = pnand %p218, %p219
      %p221 = pneg %p220
      // Predicated region
      $region29: #{tpu_custom_call.1} parent=5 // pred_check
        _
      $region30: #{tpu_custom_call.1} parent=5 // pred_check_branch
        %223 = sbr.rel (%p220) target = $region32
      $region31: #{tpu_custom_call.1} parent=5 // pred_region
        %s224 = ssub.s32 %s16, 1
        // Predicated region
        $region33: #{tpu_custom_call.1} parent=31 // pred_check
          %p225 = pneg %p61
        $region34: #{tpu_custom_call.1} parent=31 // pred_check_branch
          %227 = sbr.rel (%p225) target = $region36
        $region35: #{tpu_custom_call.1} parent=31 // pred_region
          %229 = dma.done [#allocation5], 64
        $region36: #{tpu_custom_call.1} parent=31 // pred_fallthru
          _
        %s230 = sand.u32 %s78, 1
        %s231 = scalar_lea.sflag [#allocation8], %s230
        %s232 = sand.u32 %s78, 1
        %s233 = smul.addr %s232, 64
        %s234 = scalar_lea.vmem [#allocation7], %s233
        // Predicated region
        $region37: #{tpu_custom_call.1} parent=31 // pred_check
          %p235 = pneg %p91
        $region38: #{tpu_custom_call.1} parent=31 // pred_check_branch
          %237 = sbr.rel (%p235) target = $region40
        $region39: #{tpu_custom_call.1} parent=31 // pred_region
          %239 = dma.done %s231, 1024
        $region40: #{tpu_custom_call.1} parent=31 // pred_fallthru
          _
        %p240 = pneg %p61
        %p241 = pneg %p58
        %s242 = sand.u32 %s78, 1
        %s243 = scalar_lea.sflag [#allocation8], %s242
        %s244 = sand.u32 %s78, 1
        %s245 = smul.addr %s244, 64
        %s246 = scalar_lea.vmem [#allocation7], %s245
        %p247 = pneg %p91
        %p248 = pneg %p88
        %s249 = ssub.s32 1, %s27
        %s250 = smul.u32 %s28, %s249
        %p251 = scmp.lt.s32.totalorder %s250, 0
        %s252 = scalar_select %p251, %s250, 0
        %s253 = scalar_lea.vmem %s2, %s252
        %p254 = pneg %p121
        %p255 = pneg %p118
        %p256 = pneg %p151
        %p257 = pneg %p148
        %s258 = sand.u32 %s138, 1
        %s259 = scalar_lea.sflag [#allocation6], %s258
        %s260 = sand.u32 %s138, 1
        %s261 = smul.addr %s260, 8
        %s262 = scalar_lea.vmem [#allocation9], %s261
        %s263 = ssub.s32 1, %s27
        %s264 = smul.u32 %s28, %s263
        %s265 = smul.u32 16, %s264
        %s266 = ssub.s32 1, %s27
        %s267 = smul.u32 %s28, %s266
        %p268 = scmp.lt.s32.totalorder %s267, 0
        %s269 = scalar_select %p268, %s267, 0
        %s270 = scalar_lea.vmem %s2, %s269
        %s271 = ssub.s32 1, %s27
        %s272 = smul.u32 %s28, %s271
        %s273 = smul.u32 %s28, %s27
        %p274 = scmp.eq.s32.totalorder %s27, 0
        // Predicated region
        $region41: #{tpu_custom_call.1} parent=31 // pred_check
          %p275 = pneg %p274
        $region42: #{tpu_custom_call.1} parent=31 // pred_check_branch
          %277 = sbr.rel (%p275) target = $region44
        $region43: #{tpu_custom_call.1} parent=31 // pred_region
          %v278 = vld [vmem:[#allocation4] sm:$0xf]
          %v279 = vld [vmem:[%s234] sm:$0xf]
          %v280 = vld [vmem:[%s234 + $0x4] sm:$0xf]
          %v281 = vld [vmem:[%s234 + $0x8] sm:$0xf]
          %v282 = vld [vmem:[%s234 + $0xc] sm:$0xf]
          %v283 = vld [vmem:[%s234 + $0x10] sm:$0xf]
          %v284 = vld [vmem:[%s234 + $0x14] sm:$0xf]
          %v285 = vld [vmem:[%s234 + $0x18] sm:$0xf]
          %v286 = vld [vmem:[%s234 + $0x1c] sm:$0xf]
          %v287 = vld [vmem:[%s234 + $0x20] sm:$0xf]
          %v288 = vld [vmem:[%s234 + $0x24] sm:$0xf]
          %v289 = vld [vmem:[%s234 + $0x28] sm:$0xf]
          %v290 = vld [vmem:[%s234 + $0x2c] sm:$0xf]
          %v291 = vld [vmem:[%s234 + $0x30] sm:$0xf]
          %v292 = vld [vmem:[%s234 + $0x34] sm:$0xf]
          %v293 = vld [vmem:[%s234 + $0x38] sm:$0xf]
          %v294 = vld [vmem:[%s234 + $0x3c] sm:$0xf]
          %v295 = vld [vmem:[%s270] sm:$0x1]
          %v297 = vperm.slane %v295, 0
          %v315 = vunpack.c.l.b16 %v279
          %v316 = vunpack.c.l.b16 %v280
          %v317 = vunpack.c.l.b16 %v281
          %v318 = vunpack.c.l.b16 %v282
          %v319 = vunpack.c.l.b16 %v283
          %v320 = vunpack.c.l.b16 %v284
          %v321 = vunpack.c.l.b16 %v285
          %v322 = vunpack.c.l.b16 %v286
          %v323 = vunpack.c.l.b16 %v287
          %v324 = vunpack.c.l.b16 %v288
          %v325 = vunpack.c.l.b16 %v289
          %v326 = vunpack.c.l.b16 %v290
          %v327 = vunpack.c.l.b16 %v291
          %v328 = vunpack.c.l.b16 %v292
          %v329 = vunpack.c.l.b16 %v293
          %v330 = vunpack.c.l.b16 %v294
          %v331 = vpack.c.b16 %v316, %v315
          %v332 = vpack.c.b16 %v318, %v317
          %v333 = vpack.c.b16 %v320, %v319
          %v334 = vpack.c.b16 %v322, %v321
          %v335 = vpack.c.b16 %v324, %v323
          %v336 = vpack.c.b16 %v326, %v325
          %v337 = vpack.c.b16 %v328, %v327
          %v338 = vpack.c.b16 %v330, %v329
          %347 = vmatpush.bf16.xpose.msra.mxu0 %v338
          %348 = vmatpush.bf16.xpose.msra.mxu0 %v337
          %349 = vmatpush.bf16.xpose.msra.mxu0 %v336
          %350 = vmatpush.bf16.xpose.msra.mxu0 %v335
          %351 = vmatpush.bf16.xpose.msra.mxu0 %v334
          %352 = vmatpush.bf16.xpose.msra.mxu0 %v333
          %353 = vmatpush.bf16.xpose.msra.mxu0 %v332
          %354 = vmatpush.bf16.xpose.msra.mxu0 %v331
          %355 = vmatmul.bf16.gmra.mxu0 %v278
          %v356 = vpop.f32.mrf.mxu0
          %v357 = vadd.f32 %v297, %v356
          %v358 = vpop.f32.mrf.mxu0
          %359 = vdwg.mxu0
          %s360 = smul.u32 %s28, 8
          %s361 = scalar_lea.vmem [#allocation2], %s360
          %362 = vst [vmem:[%s361] sm:$0xff] %v357
        $region44: #{tpu_custom_call.1} parent=31 // pred_fallthru
          _
        %p363 = scmp.eq.s32.totalorder %s27, 1
        %p364 = scmp.eq.s32.totalorder %s28, 0
        %p365 = pnand %p363, %p364
        %p366 = pneg %p365
        // Predicated region
        $region45: #{tpu_custom_call.1} parent=31 // pred_check
          _
        $region46: #{tpu_custom_call.1} parent=31 // pred_check_branch
          %368 = sbr.rel (%p365) target = $region48
        $region47: #{tpu_custom_call.1} parent=31 // pred_region
          %v369 = vld [vmem:[#allocation2] sm:$0xff]
          %370 = vmax.xlane.f32.xlu0 %v369
          %v371 = vpop.xlane.xlu0 %370
          %v372 = vmax.f32 %v371, -1e+30
          %v373 = vsub.f32 %v369, %v372
          %v374 = vmul.f32 %v373, 1.442695
          %v375 = vpow.pop %v374
          %376 = vadd.xlane.f32.xlu0 %v375
          %v377 = vpop.xlane.xlu0 %376
          %v378 = vadd.f32 %v377, 0.0
          %v379 = vlog2.pop %v378
          %v380 = vmul.f32 %v379, 0.6931472
          %v381 = vadd.f32 %v372, %v380
          %vm382 = vcmask 7168
          %383 = vst.msk [vmem:[#allocation3] sm:$0xff] %vm382, %v381
        $region48: #{tpu_custom_call.1} parent=31 // pred_fallthru
          _
        // Predicated region
        $region49: #{tpu_custom_call.1} parent=31 // pred_check
          %p384 = pneg %p363
        $region50: #{tpu_custom_call.1} parent=31 // pred_check_branch
          %386 = sbr.rel (%p384) target = $region52
        $region51: #{tpu_custom_call.1} parent=31 // pred_region
          %s387 = smul.u32 %s28, 8
          %s388 = scalar_lea.vmem [#allocation2], %s387
          %v389 = vld [vmem:[%s388] sm:$0xff]
          %v390 = vld [vmem:[#allocation3] sm:$0xff]
          %392 = vset.pattern.permute.xlu0 0
          %393 = vperm.xlu0 %392, %v390
          %v394 = vpop.permute.xlu0 %393
          %v396 = vsub.f32 %v389, %v394
          %397 = vst [vmem:[%s262] sm:$0xff] %v396
        $region52: #{tpu_custom_call.1} parent=31 // pred_fallthru
          _
        %s398 = sand.u32 %s138, 1
        %s399 = scalar_lea.sflag [#allocation6], %s398
        %s400 = sand.u32 %s138, 1
        %s401 = smul.addr %s400, 8
        %s402 = scalar_lea.vmem [#allocation9], %s401
        // Predicated region
        $region53: #{tpu_custom_call.1} parent=31 // pred_check
          %p403 = pneg %p148
        $region54: #{tpu_custom_call.1} parent=31 // pred_check_branch
          %405 = sbr.rel (%p403) target = $region56
        $region55: #{tpu_custom_call.1} parent=31 // pred_region
          %s406 = smul.u32 %s28, %s27
          %408 = vsyncadd %s399, 0
          %s409 = sadd.s32 %s406, %s26
          %s410 = smul.addr %s409, 8
          %s411 = scalar_lea.hbm %s3, %s410
          %s413 = sshll.u32 %s402, 4
          %s414 = int_to_ptr.vmem [resolvable:$true] %s413
          %s415 = sshll.u32 %s411, 4
          %s416 = int_to_ptr.hbm [resolvable:$true] %s415
          %418 = dma.vmem_to_hbm [thread:$0]  %s414, 128, %s416, %s399
        $region56: #{tpu_custom_call.1} parent=31 // pred_fallthru
          _
      $region32: #{tpu_custom_call.1} parent=5 // pred_fallthru
        _
      %p419 = scmp.le.s32.totalorder 2, %s16
      // Predicated region
      $region57: #{tpu_custom_call.1} parent=5 // pred_check
        %p420 = pneg %p419
      $region58: #{tpu_custom_call.1} parent=5 // pred_check_branch
        %422 = sbr.rel (%p420) target = $region60
      $region59: #{tpu_custom_call.1} parent=5 // pred_region
        %s423 = ssub.s32 %s16, 2
        // Predicated region
        $region61: #{tpu_custom_call.1} parent=59 // pred_check
          %p424 = pneg %p154
        $region62: #{tpu_custom_call.1} parent=59 // pred_check_branch
          %426 = sbr.rel (%p424) target = $region64
        $region63: #{tpu_custom_call.1} parent=59 // pred_region
          %s427 = sand.u32 %s139, 1
          %s428 = scalar_lea.sflag [#allocation6], %s427
          %s429 = sand.u32 %s139, 1
          %s430 = smul.addr %s429, 8
          %s431 = scalar_lea.vmem [#allocation9], %s430
          %433 = dma.done %s428, 128
        $region64: #{tpu_custom_call.1} parent=59 // pred_fallthru
          _
      $region60: #{tpu_custom_call.1} parent=5 // pred_fallthru
        _
    $region6: #{tpu_custom_call.1} parent=1 // loop_footer
      %s20 = sadd.s32 1, %s16
    $region7: #{tpu_custom_call.1} parent=1 // loop_footer_branch
      %15 = sbr.rel target = $region3
    $region8: #{tpu_custom_call.1} parent=1 // loop_exit
      _
    %434 = vsyncpa [#allocation5], 1
    %s435 = scalar_lea.sflag [#allocation5], 1
    %436 = vsyncpa %s435, 1
    %437 = vsyncpa [#allocation8], 1
    %s438 = scalar_lea.sflag [#allocation8], 1
    %439 = vsyncpa %s438, 1
    %440 = vsyncpa [#allocation6], 1
    %s441 = scalar_lea.sflag [#allocation6], 1
    %442 = vsyncpa %s441, 1

</llo_original>
